<compile_context>
chip_gen: v5e
topology: v5e:2x2
jax: 0.10.0
libtpu: 0.0.40
codegen_flags: <defaults>
</compile_context>

<pallas_src>
import functools

import jax
import jax.numpy as jnp
from jax.experimental import pallas as pl
from jax.experimental.pallas import tpu as pltpu


def _conv1x1_kernel(w_ref, x_ref, o_ref):
    # w_ref: (Cout, Cin) resident weight, x_ref: (Cin, ts) tile,
    # o_ref: (Cout, ts) tile (lane-dense last dim).
    o_ref[...] = jnp.dot(
        w_ref[...], x_ref[...], preferred_element_type=jnp.float32
    ).astype(o_ref.dtype)


@functools.partial(jax.jit, static_argnames=("ts",))
def _pointwise_conv(w, x3d, *, ts):
    """w: (Cout, Cin), x3d: (N, Cin, S) -> (N, Cout, S) via Pallas."""
    N, Cin, S = x3d.shape
    Cout = w.shape[0]
    grid = (N, pl.cdiv(S, ts))
    return pl.pallas_call(
        _conv1x1_kernel,
        out_shape=jax.ShapeDtypeStruct((N, Cout, S), x3d.dtype),
        grid_spec=pltpu.PrefetchScalarGridSpec(
            num_scalar_prefetch=0,
            grid=grid,
            in_specs=[
                # Tiny weight, constant block across the whole grid.
                pl.BlockSpec((Cout, Cin), lambda n, s: (0, 0)),
                # Streamed activation tile; leading batch dim squeezed out.
                pl.BlockSpec((None, Cin, ts), lambda n, s: (n, 0, s)),
            ],
            out_specs=pl.BlockSpec((None, Cout, ts), lambda n, s: (n, 0, s)),
        ),
        compiler_params=pltpu.CompilerParams(
            dimension_semantics=("parallel", "parallel"),
        ),
    )(w, x3d)


def _round_up(x, m):
    return ((x + m - 1) // m) * m


class FeatureReductionModule:
    """JAX/Pallas port of the PyTorch FeatureReductionModule."""

    # Largest streamed tile (lanes). ~1 MiB f32 x-block at Cin=32; safe for
    # v5e/v6e/v7x VMEM budgets with double buffering.
    MAX_TS = 8192

    def __init__(self, input_channels, reduction_factor=16, key=None):
        self.input_channels = input_channels
        self.reduced_channels = max(1, input_channels // reduction_factor)
        if key is None:
            key = jax.random.PRNGKey(42)
        # PyTorch Conv3d weight shape: (Cout, Cin, 1, 1, 1); kaiming-uniform
        # style init (fan_in = Cin for a 1x1x1 kernel).
        bound = 1.0 / jnp.sqrt(jnp.float32(input_channels))
        w5d = jax.random.uniform(
            key,
            (self.reduced_channels, input_channels, 1, 1, 1),
            dtype=jnp.float32,
            minval=-bound,
            maxval=bound,
        )
        self.weight = w5d                      # PyTorch layout, for reference
        self._w_mat = w5d[:, :, 0, 0, 0]       # (Cout, Cin) matmul form

    def __call__(self, x):
        # Mirror PyTorch: list inputs concatenated along dim=2 (D).
        if isinstance(x, (list, tuple)):
            x = jnp.concatenate(list(x), axis=2)
        N, C, D, H, W = x.shape
        assert C == self.input_channels
        S = D * H * W
        # Channels-first flatten: no transpose, just a (free) reshape.
        x3d = x.reshape(N, C, S)
        ts = min(self.MAX_TS, _round_up(S, 128))
        y3d = _pointwise_conv(self._w_mat, x3d, ts=ts)
        return y3d.reshape(N, self.reduced_channels, D, H, W)


if __name__ == "__main__":
    key = jax.random.PRNGKey(0)
    kx, kw, kx2 = jax.random.split(key, 3)

    # Small shapes consistent with the module: NCDHW input.
    N, C, D, H, W = 2, 32, 4, 8, 8
    x = jax.random.normal(kx, (N, C, D, H, W), dtype=jnp.float32)

    module = FeatureReductionModule(input_channels=C, reduction_factor=16, key=kw)
    y = jax.block_until_ready(module(x))

    # Reference check in plain JAX (einsum over channels).
    y_ref = jnp.einsum("ncdhw,kc->nkdhw", x, module._w_mat)
    assert y.shape == (N, module.reduced_channels, D, H, W), y.shape
    assert jnp.allclose(y, y_ref, atol=1e-5, rtol=1e-5)

    # Ragged spatial size (S = 4*5*6 = 120, not a multiple of 128) to
    # exercise the masked last-block path (no padding in HBM).
    x_rag = jax.random.normal(kx2, (N, C, 4, 5, 6), dtype=jnp.float32)
    y_rag = jax.block_until_ready(module(x_rag))
    y_rag_ref = jnp.einsum("ncdhw,kc->nkdhw", x_rag, module._w_mat)
    assert jnp.allclose(y_rag, y_rag_ref, atol=1e-5, rtol=1e-5)

    # Also exercise the list-input path (concat along D).
    y_list = jax.block_until_ready(module([x, x]))
    assert y_list.shape == (N, module.reduced_channels, 2 * D, H, W)

    print("KERNEL_OK")
</pallas_src>

<mosaic_0001>
module attributes {stable_mosaic.version = 11 : i64} {
  func.func @_conv1x1_kernel(%arg0: i32, %arg1: i32, %arg2: memref<2x32xf32, #tpu.memory_space<vmem>>, %arg3: memref<1x32x256xf32, #tpu.memory_space<vmem>>, %arg4: memref<1x2x256xf32, #tpu.memory_space<vmem>>) attributes {dimension_semantics = [#tpu.dimension_semantics<parallel>, #tpu.dimension_semantics<parallel>], iteration_bounds = array<i64: 2, 1>, scalar_prefetch = 0 : i64, scratch_operands = 0 : i64, tpu.core_type = #tpu.core_type<tc>, window_params = [{pipeline_mode = #tpu.pipeline_mode<synchronous>, transform_indices = @transform_0, window_bounds = array<i64: 2, 32>}, {transform_indices = @transform_1, window_bounds = array<i64: 1, 32, 256>}, {transform_indices = @transform_2, window_bounds = array<i64: 1, 2, 256>}]} {
    %c0 = arith.constant 0 : index
    %c0_0 = arith.constant 0 : index
    %0 = vector.load %arg2[%c0, %c0_0] : memref<2x32xf32, #tpu.memory_space<vmem>>, vector<2x32xf32>
    %c0_1 = arith.constant 0 : index
    %c0_2 = arith.constant 0 : index
    %c0_3 = arith.constant 0 : index
    %1 = vector.load %arg3[%c0_1, %c0_2, %c0_3] : memref<1x32x256xf32, #tpu.memory_space<vmem>>, vector<1x32x256xf32>
    %2 = vector.shape_cast %1 : vector<1x32x256xf32> to vector<32x256xf32>
    %cst = arith.constant dense<0.000000e+00> : vector<2x256xf32>
    %3 = tpu.matmul %0, %2, %cst {dimension_numbers = #tpu.dot_dimension_numbers<[1], [0], [0], [1], [0, 0, 1, 1], [], []>} : vector<2x32xf32>, vector<32x256xf32>, vector<2x256xf32> -> vector<2x256xf32>
    %c0_4 = arith.constant 0 : index
    %c0_5 = arith.constant 0 : index
    %c0_6 = arith.constant 0 : index
    %4 = vector.load %arg4[%c0_4, %c0_5, %c0_6] : memref<1x2x256xf32, #tpu.memory_space<vmem>>, vector<1x2x256xf32>
    %5 = vector.shape_cast %4 : vector<1x2x256xf32> to vector<2x256xf32>
    %6 = vector.shape_cast %3 : vector<2x256xf32> to vector<1x2x256xf32>
    tpu.vector_store %arg4[%c0_4, %c0_5, %c0_6], %6 {strides = array<i32>} : memref<1x2x256xf32, #tpu.memory_space<vmem>>, vector<1x2x256xf32>,
    return
  }
  func.func @transform_0(%arg0: i32, %arg1: i32) -> (i32, i32) {
    %c0_i32 = arith.constant 0 : i32
    %c0_i32_0 = arith.constant 0 : i32
    %c0_i32_1 = arith.constant 0 : i32
    return %c0_i32, %c0_i32_0 : i32, i32
  }
  func.func @transform_1(%arg0: i32, %arg1: i32) -> (i32, i32, i32) {
    %c0_i32 = arith.constant 0 : i32
    %c0_i32_0 = arith.constant 0 : i32
    return %arg0, %c0_i32, %arg1 : i32, i32, i32
  }
  func.func @transform_2(%arg0: i32, %arg1: i32) -> (i32, i32, i32) {
    %c0_i32 = arith.constant 0 : i32
    %c0_i32_0 = arith.constant 0 : i32
    return %arg0, %c0_i32, %arg1 : i32, i32, i32
  }
}

</mosaic_0001>

<llo_original>
// kernel: _pointwise_conv.1
$region0: #{_pointwise_conv.1}
  #allocation0 [shape = 'u32[]', space=smem, size = 0x4, offset = 0x4, fixed_abs, tag = 'smem constant byte address 0x4 - core index']
  #allocation1 [shape = 'u32[72,128]{1,0:T(1,128)}', space=vmem, size = 0x9000, scoped, tag = 'internal scratch']
  %s0 = inlined_call_operand.hbm [shape: f32[2,32], index: 0, kind: input, shape index: {}]
  %s1 = inlined_call_operand.hbm [shape: f32[2,32,256], index: 1, kind: input, shape index: {}]
  %s2 = inlined_call_operand.hbm [shape: f32[2,2,256], index: 2, kind: output, shape index: {}]
  %s3 = sld [smem:[#allocation0]]
  $region49: #{_pointwise_conv.1} parent=0
    _
  %s5 = ssub.s32 1, %s3
  %s6 = scalar_select 0, %s5, %s3
  $region1: #{_pointwise_conv.1} parent=0
    #allocation2 [shape = 'u8[1024]{0}', space=vmem, size = 0x400, scoped, tag = 'input window, operand 0, single buffered']
    #allocation3 [shape = 's32[2]{0}', space=sflag, size = 0x8, scoped, tag = 'scoped memory for _pointwise_conv.1']
    #allocation4 [shape = 's32[2]{0}', space=sflag, size = 0x8, scoped, tag = 'scoped memory for _pointwise_conv.1']
    #allocation5 [shape = 'u8[65536]{0}', space=vmem, size = 0x10000, scoped, tag = 'input window, operand 1']
    #allocation6 [shape = 's32[2]{0}', space=sflag, size = 0x8, scoped, tag = 'scoped memory for _pointwise_conv.1']
    #allocation7 [shape = 'u8[4096]{0}', space=vmem, size = 0x1000, scoped, tag = 'output window, operand 0']
    %7 = vsyncpa [#allocation3], 0
    %8 = vsyncpa [#allocation6], 0
    %s9 = scalar_lea.sflag [#allocation6], 1
    %10 = vsyncpa %s9, 0
    %11 = vsyncpa [#allocation4], 0
    %s12 = scalar_lea.sflag [#allocation4], 1
    %13 = vsyncpa %s12, 0
    loop: start=0, step=1, limit=4
    $region2: #{_pointwise_conv.1} parent=1 // loop_pre_header
      _
    $region3: #{_pointwise_conv.1} parent=1 // loop_header
      %s15 = sphi 0, %s19
      %p16 = scmp.ge.s32.totalorder %s15, 4
      %s22 = sphi 0, %s34
      %s23 = sphi 0, %s30
      %s24 = sphi 0, %s22
      %s25 = sphi 0, %s23
      %s26 = sphi 0, %s24
      %s27 = sphi 0, %s25
      %s35 = sphi 0, %s35
      %s37 = sphi 0, %s35
      %s38 = sphi 0, %s37
      %s52 = sphi 0, %s38
      %s60 = sphi 0, %s62
      %s63 = sphi 0, %s60
      %s64 = sphi 0, %s63
      %s80 = sphi 0, %s64
      %s88 = sphi 0, %s90
      %s91 = sphi 0, %s88
      %s92 = sphi 0, %s91
      %s108 = sphi 0, %s92
    $region4: #{_pointwise_conv.1} parent=1 // loop_header_branch
      %18 = sbr.rel (%p16) target = $region8
    $region5: #{_pointwise_conv.1} parent=1 // loop_body
      %s20 = ssub.s32 %s15, 1
      %s21 = ssub.s32 %s15, 2
      %s28 = sadd.s32 1, %s23
      %p29 = scmp.ge.s32.totalorder %s28, 1
      %s30 = scalar_select %p29, 0, %s28
      %s31 = sadd.s32 1, %s22
      %s32 = scalar_select %p29, %s31, %s22
      %p33 = scmp.ge.s32.totalorder %s32, 2
      %s34 = scalar_select %p33, 0, %s32
      %s36 = sadd.s32 %s35, 1
      %p39 = scmp.eq.s32.totalorder %s15, 1
      %p40 = scmp.ne.s32.totalorder %s35, %s37
      %p41 = scmp.eq.s32.totalorder %s15, 0
      %p42 = por %p40, %p41
      %p43 = scmp.ne.s32.totalorder %s35, %s37
      %p44 = scmp.eq.s32.totalorder %s20, 1
      %p45 = por %p43, %p44
      %p46 = scmp.ne.s32.totalorder %s37, %s38
      %p47 = scmp.eq.s32.totalorder %s20, 0
      %p48 = por %p46, %p47
      %p49 = scmp.ne.s32.totalorder %s37, %s38
      %p50 = scmp.eq.s32.totalorder %s21, 1
      %p51 = por %p49, %p50
      %p53 = scmp.ne.s32.totalorder %s38, %s52
      %p54 = scmp.eq.s32.totalorder %s21, 0
      %p55 = por %p53, %p54
      %s56 = ssub.s32 %s22, %s34
      %s57 = ssub.s32 %s23, %s30
      %s58 = sor.u32 %s56, %s57
      %p59 = scmp.eq.s32.totalorder %s58, 0
      %s61 = sadd.s32 %s60, 1
      %s62 = scalar_select %p59, %s60, %s61
      %p65 = pneg %p59
      %p66 = scmp.eq.s32.totalorder %s15, 1
      %p67 = por %p65, %p66
      %p68 = scmp.ne.s32.totalorder %s60, %s63
      %p69 = scmp.eq.s32.totalorder %s15, 0
      %p70 = por %p68, %p69
      %p71 = scmp.ne.s32.totalorder %s60, %s63
      %p72 = scmp.eq.s32.totalorder %s20, 1
      %p73 = por %p71, %p72
      %p74 = scmp.ne.s32.totalorder %s63, %s64
      %p75 = scmp.eq.s32.totalorder %s20, 0
      %p76 = por %p74, %p75
      %p77 = scmp.ne.s32.totalorder %s63, %s64
      %p78 = scmp.eq.s32.totalorder %s21, 1
      %p79 = por %p77, %p78
      %p81 = scmp.ne.s32.totalorder %s64, %s80
      %p82 = scmp.eq.s32.totalorder %s21, 0
      %p83 = por %p81, %p82
      %s84 = ssub.s32 %s22, %s34
      %s85 = ssub.s32 %s23, %s30
      %s86 = sor.u32 %s84, %s85
      %p87 = scmp.eq.s32.totalorder %s86, 0
      %s89 = sadd.s32 %s88, 1
      %s90 = scalar_select %p87, %s88, %s89
      %p93 = pneg %p87
      %p94 = scmp.eq.s32.totalorder %s15, 1
      %p95 = por %p93, %p94
      %p96 = scmp.ne.s32.totalorder %s88, %s91
      %p97 = scmp.eq.s32.totalorder %s15, 0
      %p98 = por %p96, %p97
      %p99 = scmp.ne.s32.totalorder %s88, %s91
      %p100 = scmp.eq.s32.totalorder %s20, 1
      %p101 = por %p99, %p100
      %p102 = scmp.ne.s32.totalorder %s91, %s92
      %p103 = scmp.eq.s32.totalorder %s20, 0
      %p104 = por %p102, %p103
      %p105 = scmp.ne.s32.totalorder %s91, %s92
      %p106 = scmp.eq.s32.totalorder %s21, 1
      %p107 = por %p105, %p106
      %p109 = scmp.ne.s32.totalorder %s92, %s108
      %p110 = scmp.eq.s32.totalorder %s21, 0
      %p111 = por %p109, %p110
      %p112 = scmp.le.s32.totalorder 1, %s15
      %p113 = scmp.lt.s32.totalorder %s15, 3
      %p114 = pnand %p112, %p113
      %p115 = pneg %p114
      // Predicated region
      $region9: #{_pointwise_conv.1} parent=5 // pred_check
        _
      $region10: #{_pointwise_conv.1} parent=5 // pred_check_branch
        %117 = sbr.rel (%p114) target = $region12
      $region11: #{_pointwise_conv.1} parent=5 // pred_region
        %s118 = ssub.s32 %s15, 1
        // Predicated region
        $region13: #{_pointwise_conv.1} parent=11 // pred_check
          %p119 = pneg %p48
        $region14: #{_pointwise_conv.1} parent=11 // pred_check_branch
          %121 = sbr.rel (%p119) target = $region16
        $region15: #{_pointwise_conv.1} parent=11 // pred_region
          %123 = vsyncadd [#allocation3], 0
          %s125 = sshll.u32 %s0, 4
          %s126 = int_to_ptr.hbm [resolvable:$true] %s125
          %s127 = sshll.u32 [#allocation2], 4
          %s128 = int_to_ptr.vmem [resolvable:$true] %s127
          %130 = dma.hbm_to_vmem [thread:$0]  %s126, 32, %s128, [#allocation3]
        $region16: #{_pointwise_conv.1} parent=11 // pred_fallthru
          _
      $region12: #{_pointwise_conv.1} parent=5 // pred_fallthru
        _
      %p131 = scmp.lt.s32.totalorder %s15, 2
      // Predicated region
      $region17: #{_pointwise_conv.1} parent=5 // pred_check
        %p132 = pneg %p131
      $region18: #{_pointwise_conv.1} parent=5 // pred_check_branch
        %134 = sbr.rel (%p132) target = $region20
      $region19: #{_pointwise_conv.1} parent=5 // pred_region
        // Predicated region
        $region21: #{_pointwise_conv.1} parent=19 // pred_check
          %p135 = pneg %p70
        $region22: #{_pointwise_conv.1} parent=19 // pred_check_branch
          %137 = sbr.rel (%p135) target = $region24
        $region23: #{_pointwise_conv.1} parent=19 // pred_region
          %s138 = sand.u32 %s60, 1
          %s139 = scalar_lea.sflag [#allocation6], %s138
          %s140 = sand.u32 %s60, 1
          %s141 = smul.addr %s140, 64
          %s142 = scalar_lea.vmem [#allocation5], %s141
          %s143 = smul.u32 2, %s23
          %145 = vsyncadd %s139, 0
          %s146 = smul.addr %s22, 8
          %s147 = sadd.s32 %s143, %s146
          %s148 = smul.addr %s147, 8
          %s149 = scalar_lea.hbm %s1, %s148
          %s150 = sshll.u32 %s149, 4
          %s151 = int_to_ptr.hbm [resolvable:$true] %s150
          %s152 = sshll.u32 %s142, 4
          %s153 = int_to_ptr.vmem [resolvable:$true] %s152
          %158 = dma.hbm_to_vmem [thread:$0]  %s151, 1024, %s153, %s139, 256, 256, 16
        $region24: #{_pointwise_conv.1} parent=19 // pred_fallthru
          _
      $region20: #{_pointwise_conv.1} parent=5 // pred_fallthru
        _
      %p159 = scmp.le.s32.totalorder 1, %s15
      %p160 = scmp.lt.s32.totalorder %s15, 3
      %p161 = pnand %p159, %p160
      %p162 = pneg %p161
      // Predicated region
      $region25: #{_pointwise_conv.1} parent=5 // pred_check
        _
      $region26: #{_pointwise_conv.1} parent=5 // pred_check_branch
        %164 = sbr.rel (%p161) target = $region28
      $region27: #{_pointwise_conv.1} parent=5 // pred_region
        %s165 = ssub.s32 %s15, 1
        // Predicated region
        $region29: #{_pointwise_conv.1} parent=27 // pred_check
          %p166 = pneg %p48
        $region30: #{_pointwise_conv.1} parent=27 // pred_check_branch
          %168 = sbr.rel (%p166) target = $region32
        $region31: #{_pointwise_conv.1} parent=27 // pred_region
          %170 = dma.done [#allocation3], 32
        $region32: #{_pointwise_conv.1} parent=27 // pred_fallthru
          _
        %s171 = sand.u32 %s63, 1
        %s172 = scalar_lea.sflag [#allocation6], %s171
        %s173 = sand.u32 %s63, 1
        %s174 = smul.addr %s173, 64
        %s175 = scalar_lea.vmem [#allocation5], %s174
        // Predicated region
        $region33: #{_pointwise_conv.1} parent=27 // pred_check
          %p176 = pneg %p76
        $region34: #{_pointwise_conv.1} parent=27 // pred_check_branch
          %178 = sbr.rel (%p176) target = $region36
        $region35: #{_pointwise_conv.1} parent=27 // pred_region
          %180 = dma.done %s172, 1024
        $region36: #{_pointwise_conv.1} parent=27 // pred_fallthru
          _
        %p181 = pneg %p48
        %p182 = pneg %p45
        %s183 = sand.u32 %s63, 1
        %s184 = scalar_lea.sflag [#allocation6], %s183
        %s185 = sand.u32 %s63, 1
        %s186 = smul.addr %s185, 64
        %s187 = scalar_lea.vmem [#allocation5], %s186
        %p188 = pneg %p76
        %p189 = pneg %p73
        %p190 = pneg %p104
        %p191 = pneg %p101
        %s192 = sand.u32 %s91, 1
        %s193 = scalar_lea.sflag [#allocation4], %s192
        %s194 = sand.u32 %s91, 1
        %s195 = smul.addr %s194, 4
        %s196 = scalar_lea.vmem [#allocation7], %s195
        %s197 = smul.u32 2, %s25
        %s198 = smul.u32 2, %s25
        %v199 = vld [vmem:[#allocation2] sm:$0x3]
        %v200 = vld [vmem:[%s175] sm:$0xff]
        %v201 = vld [vmem:[%s175 + $0x8] sm:$0xff]
        %v202 = vld [vmem:[%s175 + $0x10] sm:$0xff]
        %v203 = vld [vmem:[%s175 + $0x18] sm:$0xff]
        %v204 = vld [vmem:[%s175 + $0x20] sm:$0xff]
        %v205 = vld [vmem:[%s175 + $0x28] sm:$0xff]
        %v206 = vld [vmem:[%s175 + $0x30] sm:$0xff]
        %v207 = vld [vmem:[%s175 + $0x38] sm:$0xff]
        %vm208 = vcmask 261120
        %v210 = vsel %vm208, %v199, 0
        %212 = vmatpush.msra.mxu0 0.0
        %213 = vmatpush.msra.mxu0 0.0
        %214 = vmatpush.msra.mxu0 0.0
        %215 = vmatpush.msra.mxu0 0.0
        %216 = vmatpush.msra.mxu0 0.0
        %217 = vmatpush.msra.mxu0 0.0
        %218 = vmatpush.msra.mxu0 0.0
        %219 = vmatpush.msra.mxu0 0.0
        %220 = vmatpush.msra.mxu0 0.0
        %221 = vmatpush.msra.mxu0 0.0
        %222 = vmatpush.msra.mxu0 0.0
        %223 = vmatpush.msra.mxu0 0.0
        %224 = vmatpush.msra.mxu0 %v206
        %225 = vmatpush.msra.mxu0 %v204
        %226 = vmatpush.msra.mxu0 %v202
        %227 = vmatpush.msra.mxu0 %v200
        %228 = vmatmul.f32.gmra.mxu0 %v210
        %v229 = vpop.f32.mrf.mxu0
        %v230 = vadd.f32 0.0, %v229
        %231 = vdwg.mxu0
        %232 = vmatpush.msra.mxu0 0.0
        %233 = vmatpush.msra.mxu0 0.0
        %234 = vmatpush.msra.mxu0 0.0
        %235 = vmatpush.msra.mxu0 0.0
        %236 = vmatpush.msra.mxu0 0.0
        %237 = vmatpush.msra.mxu0 0.0
        %238 = vmatpush.msra.mxu0 0.0
        %239 = vmatpush.msra.mxu0 0.0
        %240 = vmatpush.msra.mxu0 0.0
        %241 = vmatpush.msra.mxu0 0.0
        %242 = vmatpush.msra.mxu0 0.0
        %243 = vmatpush.msra.mxu0 0.0
        %244 = vmatpush.msra.mxu0 %v207
        %245 = vmatpush.msra.mxu0 %v205
        %246 = vmatpush.msra.mxu0 %v203
        %247 = vmatpush.msra.mxu0 %v201
        %248 = vmatmul.f32.gmra.mxu0 %v210
        %v249 = vpop.f32.mrf.mxu0
        %v250 = vadd.f32 0.0, %v249
        %251 = vdwg.mxu0
        %v254 = vrot.slane %v250, 6
        %vm255 = vcmask 1041408
        %v256 = vsel %vm255, %v230, %v254
        %258 = vst [vmem:[%s196] sm:$0xf] %v256
        %s259 = sand.u32 %s91, 1
        %s260 = scalar_lea.sflag [#allocation4], %s259
        %s261 = sand.u32 %s91, 1
        %s262 = smul.addr %s261, 4
        %s263 = scalar_lea.vmem [#allocation7], %s262
        // Predicated region
        $region37: #{_pointwise_conv.1} parent=27 // pred_check
          %p264 = pneg %p101
        $region38: #{_pointwise_conv.1} parent=27 // pred_check_branch
          %266 = sbr.rel (%p264) target = $region40
        $region39: #{_pointwise_conv.1} parent=27 // pred_region
          %s267 = smul.u32 2, %s25
          %269 = vsyncadd %s260, 0
          %s270 = smul.addr %s24, 2
          %s271 = sadd.s32 %s267, %s270
          %s272 = smul.addr %s271, 2
          %s273 = scalar_lea.hbm %s2, %s272
          %s275 = sshll.u32 %s263, 4
          %s276 = int_to_ptr.vmem [resolvable:$true] %s275
          %s277 = sshll.u32 %s273, 4
          %s278 = int_to_ptr.hbm [resolvable:$true] %s277
          %280 = dma.vmem_to_hbm [thread:$0]  %s276, 64, %s278, %s260
        $region40: #{_pointwise_conv.1} parent=27 // pred_fallthru
          _
      $region28: #{_pointwise_conv.1} parent=5 // pred_fallthru
        _
      %p281 = scmp.le.s32.totalorder 2, %s15
      // Predicated region
      $region41: #{_pointwise_conv.1} parent=5 // pred_check
        %p282 = pneg %p281
      $region42: #{_pointwise_conv.1} parent=5 // pred_check_branch
        %284 = sbr.rel (%p282) target = $region44
      $region43: #{_pointwise_conv.1} parent=5 // pred_region
        %s285 = ssub.s32 %s15, 2
        // Predicated region
        $region45: #{_pointwise_conv.1} parent=43 // pred_check
          %p286 = pneg %p107
        $region46: #{_pointwise_conv.1} parent=43 // pred_check_branch
          %288 = sbr.rel (%p286) target = $region48
        $region47: #{_pointwise_conv.1} parent=43 // pred_region
          %s289 = sand.u32 %s92, 1
          %s290 = scalar_lea.sflag [#allocation4], %s289
          %s291 = sand.u32 %s92, 1
          %s292 = smul.addr %s291, 4
          %s293 = scalar_lea.vmem [#allocation7], %s292
          %295 = dma.done %s290, 64
        $region48: #{_pointwise_conv.1} parent=43 // pred_fallthru
          _
      $region44: #{_pointwise_conv.1} parent=5 // pred_fallthru
        _
    $region6: #{_pointwise_conv.1} parent=1 // loop_footer
      %s19 = sadd.s32 1, %s15
    $region7: #{_pointwise_conv.1} parent=1 // loop_footer_branch
      %14 = sbr.rel target = $region3
    $region8: #{_pointwise_conv.1} parent=1 // loop_exit
      _
    %296 = vsyncpa [#allocation3], 1
    %s297 = scalar_lea.sflag [#allocation3], 1
    %298 = vsyncpa %s297, 1
    %299 = vsyncpa [#allocation6], 1
    %s300 = scalar_lea.sflag [#allocation6], 1
    %301 = vsyncpa %s300, 1
    %302 = vsyncpa [#allocation4], 1
    %s303 = scalar_lea.sflag [#allocation4], 1
    %304 = vsyncpa %s303, 1

</llo_original>
